<compile_context>
chip_gen: v7x
topology: tpu7x:2x2x1
jax: 0.10.0
libtpu: 0.0.40
codegen_flags: <defaults>
</compile_context>

<pallas_src>
import functools
import math

import jax
import jax.numpy as jnp
from jax import lax
from jax.experimental import pallas as pl
from jax.experimental.pallas import tpu as pltpu

LANE = 128
# 8192 rows * 128 lanes * 4 B = 4 MiB per f32 input block; two inputs,
# double-buffered => <= 16 MiB of pipeline buffers, well under the 32 MiB
# scoped limit requested below and under v7x's 64 MiB physical VMEM.
MAX_CHUNK_ROWS = 8192
# In-kernel strip-mine width: keeps the fused sigmoid+mul+reduce temporaries
# to ~0.5 MiB sub-blocks so nothing spills even at 4 MiB tiles.
SUB_ROWS = 1024
VMEM_LIMIT_BYTES = 32 * 1024 * 1024


def _dice_partial_kernel(pred_ref, targ_ref, out_ref, inter_ref, union_ref, *,
                         chunk_rows, sub_rows, last_chunk_rows):
    """Accumulate per-batch (intersection, union) lane partials.

    pred_ref / targ_ref : (1, chunk_rows, LANE) tile of batch element b
                          (native dtype; upcast to f32 per sub-block).
    out_ref             : (1, 2, LANE) f32; row 0 = intersection partials,
                          row 1 = union partials (cross-lane sum done in JAX).
    inter_ref/union_ref : (1, LANE) f32 lane-resident scratch accumulators.
    """
    k = pl.program_id(1)
    last = pl.num_programs(1) - 1

    @pl.when(k == 0)
    def _():
        inter_ref[...] = jnp.zeros_like(inter_ref)
        union_ref[...] = jnp.zeros_like(union_ref)

    def accum_block(row_off, block_rows):
        p = pred_ref[0, pl.ds(row_off, block_rows), :].astype(jnp.float32)
        t = targ_ref[0, pl.ds(row_off, block_rows), :].astype(jnp.float32)
        # sigmoid(x) == 0.5 * tanh(0.5 * x) + 0.5  -> one EUP op per element.
        p = 0.5 * jnp.tanh(0.5 * p) + 0.5
        # One sublane reduce per sub-block; fuse sum(p)+sum(t) as sum(p+t).
        inter_ref[...] += jnp.sum(p * t, axis=0, keepdims=True)
        union_ref[...] += jnp.sum(p + t, axis=0, keepdims=True)

    def run_chunk(total_rows):
        # total_rows is a Python int -> all slices below have static shapes.
        full = total_rows // sub_rows
        rem = total_rows - full * sub_rows
        if full == 1:
            accum_block(0, sub_rows)
        elif full > 1:
            def body(s, carry):
                accum_block(pl.multiple_of(s * sub_rows, sub_rows), sub_rows)
                return carry
            lax.fori_loop(0, full, body, 0, unroll=True)
        if rem:
            accum_block(full * sub_rows, rem)

    if last_chunk_rows == chunk_rows:
        # Reduction axis divides evenly: one unconditional fast path.
        run_chunk(chunk_rows)
    else:
        # Only the final chunk is short: process exactly its valid rows, so no
        # iota/compare/select masking is ever emitted and the unspecified OOB
        # rows of the partial trailing block are never read.
        @pl.when(k != last)
        def _():
            run_chunk(chunk_rows)

        @pl.when(k == last)
        def _():
            run_chunk(last_chunk_rows)

    @pl.when(k == last)
    def _():
        out_ref[0, 0:1, :] = inter_ref[...]
        out_ref[0, 1:2, :] = union_ref[...]


def dice_loss(pred_logits, target, smooth=1e-6, *,
              max_chunk_rows=MAX_CHUNK_ROWS, sub_rows=None):
    """Pallas TPU forward of the PyTorch DiceLoss module."""
    B = pred_logits.shape[0]
    n = math.prod(pred_logits.shape[1:])

    # Stream the target in its native (narrow) dtype; the kernel upcasts per
    # tile.  Bool refs are awkward on TPU, so bump bool -> uint8.
    if target.dtype == jnp.bool_:
        target = target.astype(jnp.uint8)

    pred_flat = pred_logits.reshape(B, n)
    targ_flat = target.reshape(B, n)

    # Lane-ragged tail (n % 128 != 0): pad pred with a large negative logit
    # (sigmoid -> exactly 0) and target with 0, so padded lanes contribute
    # nothing and the kernel needs no masking.  Aligned case: no pad, no copy.
    # TODO(synk): for ragged shapes the pad is one extra HBM copy; could be
    # removed via allow_input_fusion or a separate tiny JAX tail-reduction.
    pad = (-n) % LANE
    if pad:
        pred_flat = jnp.pad(pred_flat, ((0, 0), (0, pad)), constant_values=-1e4)
        targ_flat = jnp.pad(targ_flat, ((0, 0), (0, pad)))
    rows = (n + pad) // LANE

    pred3 = pred_flat.reshape(B, rows, LANE)
    targ3 = targ_flat.reshape(B, rows, LANE)

    chunk_rows = rows if rows <= max_chunk_rows else max_chunk_rows
    num_chunks = int(pl.cdiv(rows, chunk_rows))
    last_chunk_rows = rows - (num_chunks - 1) * chunk_rows
    if sub_rows is None:
        sub_rows = min(SUB_ROWS, chunk_rows)

    kernel = functools.partial(
        _dice_partial_kernel,
        chunk_rows=int(chunk_rows),
        sub_rows=int(sub_rows),
        last_chunk_rows=int(last_chunk_rows),
    )

    partials = pl.pallas_call(
        kernel,
        out_shape=jax.ShapeDtypeStruct((B, 2, LANE), jnp.float32),
        grid_spec=pltpu.PrefetchScalarGridSpec(
            num_scalar_prefetch=0,
            grid=(B, num_chunks),
            in_specs=[
                pl.BlockSpec((1, chunk_rows, LANE), lambda b, k: (b, k, 0)),
                pl.BlockSpec((1, chunk_rows, LANE), lambda b, k: (b, k, 0)),
            ],
            out_specs=pl.BlockSpec((1, 2, LANE), lambda b, k: (b, 0, 0)),
            scratch_shapes=[
                pltpu.VMEM((1, LANE), jnp.float32),   # intersection partials
                pltpu.VMEM((1, LANE), jnp.float32),   # union partials
            ],
        ),
        # TODO(synk): on v7x with tiny B, pltpu.CORE_PARALLEL on the batch axis
        # (or splitting the chunk axis across the 2 TCs) can ~2x throughput.
        compiler_params=pltpu.CompilerParams(
            dimension_semantics=("parallel", "arbitrary"),
            vmem_limit_bytes=VMEM_LIMIT_BYTES),
    )(pred3, targ3)

    # Tiny final glue in JAX: cross-lane sums, dice division, batch mean.
    inter = jnp.sum(partials[:, 0, :], axis=-1)
    union = jnp.sum(partials[:, 1, :], axis=-1)
    dice = (2.0 * inter + smooth) / (union + smooth)
    return (1.0 - jnp.mean(dice)).astype(jnp.float32)


def dice_loss_ref(pred_logits, target, smooth=1e-6):
    """Pure-JAX reference mirroring the PyTorch forward."""
    B = pred_logits.shape[0]
    p = jax.nn.sigmoid(pred_logits.astype(jnp.float32)).reshape(B, -1)
    t = target.astype(jnp.float32).reshape(B, -1)
    inter = jnp.sum(p * t, axis=1)
    union = jnp.sum(p, axis=1) + jnp.sum(t, axis=1)
    dice = (2.0 * inter + smooth) / (union + smooth)
    return 1.0 - jnp.mean(dice)


if __name__ == "__main__":
    key = jax.random.PRNGKey(0)

    def run_check(idx, shape, targ_dtype=jnp.float32, **kwargs):
        k1, k2 = jax.random.split(jax.random.fold_in(key, idx))
        pred = jax.random.normal(k1, shape, dtype=jnp.float32)
        targ = (jax.random.uniform(k2, shape) > 0.5).astype(targ_dtype)
        out = jax.block_until_ready(dice_loss(pred, targ, **kwargs))
        ref = jax.block_until_ready(dice_loss_ref(pred, targ))
        assert jnp.allclose(out, ref, atol=1e-5, rtol=1e-5), (shape, out, ref)

    # Primary small case consistent with the module (NCHW logits + binary mask).
    run_check(0, (2, 4, 16, 16))
    # Target streamed in its native narrow dtype (uint8 mask), no wrapper upcast.
    run_check(1, (2, 4, 32, 32), targ_dtype=jnp.uint8)
    # Lane-ragged tail + multi-chunk reduction with a short final chunk
    # (small chunk/sub sizes only to exercise those code paths cheaply).
    run_check(2, (2, 3, 40, 40), max_chunk_rows=16, sub_rows=8)
    # Strip-mine remainder path (chunk not a multiple of sub_rows).
    run_check(3, (2, 3, 40, 40), max_chunk_rows=24, sub_rows=16)

    print("KERNEL_OK")
</pallas_src>

<mosaic_0001>
module attributes {stable_mosaic.version = 11 : i64} {
  func.func @_dice_partial_kernel(%arg0: i32, %arg1: i32, %arg2: memref<1x8x128xf32, #tpu.memory_space<vmem>>, %arg3: memref<1x8x128xf32, #tpu.memory_space<vmem>>, %arg4: memref<1x2x128xf32, #tpu.memory_space<vmem>>, %arg5: memref<1x128xf32, #tpu.memory_space<vmem>>, %arg6: memref<1x128xf32, #tpu.memory_space<vmem>>) attributes {dimension_semantics = [#tpu.dimension_semantics<parallel>, #tpu.dimension_semantics<arbitrary>], iteration_bounds = array<i64: 2, 1>, scalar_prefetch = 0 : i64, scratch_operands = 2 : i64, tpu.core_type = #tpu.core_type<tc>, window_params = [{transform_indices = @transform_0, window_bounds = array<i64: 1, 8, 128>}, {transform_indices = @transform_1, window_bounds = array<i64: 1, 8, 128>}, {transform_indices = @transform_2, window_bounds = array<i64: 1, 2, 128>}]} {
    %c0_i32 = arith.constant 0 : i32
    %0 = arith.cmpi eq, %arg1, %c0_i32 : i32
    %1 = arith.extui %0 : i1 to i32
    %c0_i32_0 = arith.constant 0 : i32
    %2 = arith.cmpi ne, %1, %c0_i32_0 : i32
    scf.if %2 {
      %cst_20 = arith.constant 0.000000e+00 : f32
      %29 = vector.broadcast %cst_20 : f32 to vector<1x128xf32>
      %c0_21 = arith.constant 0 : index
      %c0_22 = arith.constant 0 : index
      %30 = vector.load %arg5[%c0_21, %c0_22] : memref<1x128xf32, #tpu.memory_space<vmem>>, vector<1x128xf32>
      tpu.vector_store %arg5[%c0_21, %c0_22], %29 {strides = array<i32>} : memref<1x128xf32, #tpu.memory_space<vmem>>, vector<1x128xf32>,
      %cst_23 = arith.constant 0.000000e+00 : f32
      %31 = vector.broadcast %cst_23 : f32 to vector<1x128xf32>
      %c0_24 = arith.constant 0 : index
      %c0_25 = arith.constant 0 : index
      %32 = vector.load %arg6[%c0_24, %c0_25] : memref<1x128xf32, #tpu.memory_space<vmem>>, vector<1x128xf32>
      tpu.vector_store %arg6[%c0_24, %c0_25], %31 {strides = array<i32>} : memref<1x128xf32, #tpu.memory_space<vmem>>, vector<1x128xf32>,
    } else {
    }
    %c0 = arith.constant 0 : index
    %c0_1 = arith.constant 0 : index
    %c0_2 = arith.constant 0 : index
    %3 = vector.load %arg2[%c0, %c0_1, %c0_2] : memref<1x8x128xf32, #tpu.memory_space<vmem>>, vector<1x8x128xf32>
    %4 = vector.shape_cast %3 : vector<1x8x128xf32> to vector<8x128xf32>
    %c0_3 = arith.constant 0 : index
    %c0_4 = arith.constant 0 : index
    %c0_5 = arith.constant 0 : index
    %5 = vector.load %arg3[%c0_3, %c0_4, %c0_5] : memref<1x8x128xf32, #tpu.memory_space<vmem>>, vector<1x8x128xf32>
    %6 = vector.shape_cast %5 : vector<1x8x128xf32> to vector<8x128xf32>
    %cst = arith.constant 5.000000e-01 : f32
    %7 = vector.broadcast %cst : f32 to vector<8x128xf32>
    %8 = arith.mulf %7, %4 : vector<8x128xf32>
    %9 = math.tanh %8 : vector<8x128xf32>
    %cst_6 = arith.constant 5.000000e-01 : f32
    %10 = vector.broadcast %cst_6 : f32 to vector<8x128xf32>
    %11 = arith.mulf %10, %9 : vector<8x128xf32>
    %cst_7 = arith.constant 5.000000e-01 : f32
    %12 = vector.broadcast %cst_7 : f32 to vector<8x128xf32>
    %13 = arith.addf %11, %12 : vector<8x128xf32>
    %c0_8 = arith.constant 0 : index
    %c0_9 = arith.constant 0 : index
    %14 = vector.load %arg5[%c0_8, %c0_9] : memref<1x128xf32, #tpu.memory_space<vmem>>, vector<1x128xf32>
    %15 = arith.mulf %13, %6 : vector<8x128xf32>
    %cst_10 = arith.constant dense<0.000000e+00> : vector<128xf32>
    %16 = vector.multi_reduction <add>, %15, %cst_10 [0] : vector<8x128xf32> to vector<128xf32>
    %17 = vector.shape_cast %16 : vector<128xf32> to vector<1x128xf32>
    %18 = arith.addf %14, %17 : vector<1x128xf32>
    %c0_11 = arith.constant 0 : index
    %c0_12 = arith.constant 0 : index
    %19 = vector.load %arg5[%c0_11, %c0_12] : memref<1x128xf32, #tpu.memory_space<vmem>>, vector<1x128xf32>
    tpu.vector_store %arg5[%c0_11, %c0_12], %18 {strides = array<i32>} : memref<1x128xf32, #tpu.memory_space<vmem>>, vector<1x128xf32>,
    %c0_13 = arith.constant 0 : index
    %c0_14 = arith.constant 0 : index
    %20 = vector.load %arg6[%c0_13, %c0_14] : memref<1x128xf32, #tpu.memory_space<vmem>>, vector<1x128xf32>
    %21 = arith.addf %13, %6 : vector<8x128xf32>
    %cst_15 = arith.constant dense<0.000000e+00> : vector<128xf32>
    %22 = vector.multi_reduction <add>, %21, %cst_15 [0] : vector<8x128xf32> to vector<128xf32>
    %23 = vector.shape_cast %22 : vector<128xf32> to vector<1x128xf32>
    %24 = arith.addf %20, %23 : vector<1x128xf32>
    %c0_16 = arith.constant 0 : index
    %c0_17 = arith.constant 0 : index
    %25 = vector.load %arg6[%c0_16, %c0_17] : memref<1x128xf32, #tpu.memory_space<vmem>>, vector<1x128xf32>
    tpu.vector_store %arg6[%c0_16, %c0_17], %24 {strides = array<i32>} : memref<1x128xf32, #tpu.memory_space<vmem>>, vector<1x128xf32>,
    %c0_i32_18 = arith.constant 0 : i32
    %26 = arith.cmpi eq, %arg1, %c0_i32_18 : i32
    %27 = arith.extui %26 : i1 to i32
    %c0_i32_19 = arith.constant 0 : i32
    %28 = arith.cmpi ne, %27, %c0_i32_19 : i32
    scf.if %28 {
      %c0_20 = arith.constant 0 : index
      %c0_21 = arith.constant 0 : index
      %29 = vector.load %arg5[%c0_20, %c0_21] : memref<1x128xf32, #tpu.memory_space<vmem>>, vector<1x128xf32>
      %c0_22 = arith.constant 0 : index
      %c0_23 = arith.constant 0 : index
      %c0_24 = arith.constant 0 : index
      %30 = vector.load %arg4[%c0_22, %c0_23, %c0_24] : memref<1x2x128xf32, #tpu.memory_space<vmem>>, vector<1x1x128xf32>
      %31 = vector.shape_cast %30 : vector<1x1x128xf32> to vector<1x128xf32>
      %32 = vector.shape_cast %29 : vector<1x128xf32> to vector<1x1x128xf32>
      tpu.vector_store %arg4[%c0_22, %c0_23, %c0_24], %32 {strides = array<i32>} : memref<1x2x128xf32, #tpu.memory_space<vmem>>, vector<1x1x128xf32>,
      %c0_25 = arith.constant 0 : index
      %c0_26 = arith.constant 0 : index
      %33 = vector.load %arg6[%c0_25, %c0_26] : memref<1x128xf32, #tpu.memory_space<vmem>>, vector<1x128xf32>
      %c0_27 = arith.constant 0 : index
      %c1 = arith.constant 1 : index
      %c0_28 = arith.constant 0 : index
      %34 = vector.load %arg4[%c0_27, %c1, %c0_28] : memref<1x2x128xf32, #tpu.memory_space<vmem>>, vector<1x1x128xf32>
      %35 = vector.shape_cast %34 : vector<1x1x128xf32> to vector<1x128xf32>
      %36 = vector.shape_cast %33 : vector<1x128xf32> to vector<1x1x128xf32>
      tpu.vector_store %arg4[%c0_27, %c1, %c0_28], %36 {strides = array<i32>} : memref<1x2x128xf32, #tpu.memory_space<vmem>>, vector<1x1x128xf32>,
    } else {
    }
    return
  }
  func.func @transform_0(%arg0: i32, %arg1: i32) -> (i32, i32, i32) {
    %c0_i32 = arith.constant 0 : i32
    %c0_i32_0 = arith.constant 0 : i32
    return %arg0, %arg1, %c0_i32 : i32, i32, i32
  }
  func.func @transform_1(%arg0: i32, %arg1: i32) -> (i32, i32, i32) {
    %c0_i32 = arith.constant 0 : i32
    %c0_i32_0 = arith.constant 0 : i32
    return %arg0, %arg1, %c0_i32 : i32, i32, i32
  }
  func.func @transform_2(%arg0: i32, %arg1: i32) -> (i32, i32, i32) {
    %c0_i32 = arith.constant 0 : i32
    %c0_i32_0 = arith.constant 0 : i32
    %c0_i32_1 = arith.constant 0 : i32
    return %arg0, %c0_i32, %c0_i32_0 : i32, i32, i32
  }
}

</mosaic_0001>

<llo_original>
// kernel: tpu_custom_call.1
$region0: #{tpu_custom_call.1}
  #allocation0 [shape = 'u32[]', space=smem, size = 0x4, offset = 0x4, fixed_abs, tag = 'smem constant byte address 0x4 - core index']
  #allocation1 [shape = 'u32[144,128]{1,0:T(1,128)}', space=vmem, size = 0x12000, scoped, tag = 'internal scratch']
  #allocation2 [shape = 'f32[1,128]{1,0:T(1,128)}', space=vmem, size = 0x200, scoped, tag = 'scratch operand']
  #allocation3 [shape = 'f32[1,128]{1,0:T(1,128)}', space=vmem, size = 0x200, scoped, tag = 'scratch operand']
  %s0 = inlined_call_operand.hbm [shape: f32[2,8,128], index: 0, kind: input, shape index: {}]
  %s1 = inlined_call_operand.hbm [shape: f32[2,8,128], index: 1, kind: input, shape index: {}]
  %s2 = inlined_call_operand.hbm [shape: f32[2,2,128], index: 2, kind: output, shape index: {}]
  %s3 = sld [smem:[#allocation0]]
  $region57: #{tpu_custom_call.1} parent=0
    _
  %s5 = ssub.s32 1, %s3
  %s6 = scalar_select 0, %s5, %s3
  $region1: #{tpu_custom_call.1} parent=0
    #allocation4 [shape = 'u8[8192]{0}', space=vmem, size = 0x2000, scoped, tag = 'input window, operand 0']
    #allocation5 [shape = 's32[2]{0}', space=sflag, size = 0x8, scoped, tag = 'scoped memory for tpu_custom_call.1']
    #allocation6 [shape = 's32[2]{0}', space=sflag, size = 0x8, scoped, tag = 'scoped memory for tpu_custom_call.1']
    #allocation7 [shape = 'u8[8192]{0}', space=vmem, size = 0x2000, scoped, tag = 'input window, operand 1']
    #allocation8 [shape = 's32[2]{0}', space=sflag, size = 0x8, scoped, tag = 'scoped memory for tpu_custom_call.1']
    #allocation9 [shape = 'u8[2048]{0}', space=vmem, size = 0x800, scoped, tag = 'output window, operand 0']
    %7 = vsyncpa [#allocation5], 0
    %s8 = scalar_lea.sflag [#allocation5], 1
    %9 = vsyncpa %s8, 0
    %10 = vsyncpa [#allocation8], 0
    %s11 = scalar_lea.sflag [#allocation8], 1
    %12 = vsyncpa %s11, 0
    %13 = vsyncpa [#allocation6], 0
    %s14 = scalar_lea.sflag [#allocation6], 1
    %15 = vsyncpa %s14, 0
    loop: start=0, step=1, limit=4
    $region2: #{tpu_custom_call.1} parent=1 // loop_pre_header
      _
    $region3: #{tpu_custom_call.1} parent=1 // loop_header
      %s17 = sphi 0, %s21
      %p18 = scmp.ge.s32.totalorder %s17, 4
      %s24 = sphi 0, %s36
      %s25 = sphi 0, %s32
      %s26 = sphi 0, %s24
      %s27 = sphi 0, %s25
      %s28 = sphi 0, %s26
      %s29 = sphi 0, %s27
      %s41 = sphi 0, %s43
      %s44 = sphi 0, %s41
      %s45 = sphi 0, %s44
      %s61 = sphi 0, %s45
      %s69 = sphi 0, %s71
      %s72 = sphi 0, %s69
      %s73 = sphi 0, %s72
      %s89 = sphi 0, %s73
      %s95 = sphi 0, %s97
      %s98 = sphi 0, %s95
      %s99 = sphi 0, %s98
      %s115 = sphi 0, %s99
    $region4: #{tpu_custom_call.1} parent=1 // loop_header_branch
      %20 = sbr.rel (%p18) target = $region8
    $region5: #{tpu_custom_call.1} parent=1 // loop_body
      %s22 = ssub.s32 %s17, 1
      %s23 = ssub.s32 %s17, 2
      %s30 = sadd.s32 1, %s25
      %p31 = scmp.ge.s32.totalorder %s30, 1
      %s32 = scalar_select %p31, 0, %s30
      %s33 = sadd.s32 1, %s24
      %s34 = scalar_select %p31, %s33, %s24
      %p35 = scmp.ge.s32.totalorder %s34, 2
      %s36 = scalar_select %p35, 0, %s34
      %s37 = ssub.s32 %s24, %s36
      %s38 = ssub.s32 %s25, %s32
      %s39 = sor.u32 %s37, %s38
      %p40 = scmp.eq.s32.totalorder %s39, 0
      %s42 = sadd.s32 %s41, 1
      %s43 = scalar_select %p40, %s41, %s42
      %p46 = pneg %p40
      %p47 = scmp.eq.s32.totalorder %s17, 1
      %p48 = por %p46, %p47
      %p49 = scmp.ne.s32.totalorder %s41, %s44
      %p50 = scmp.eq.s32.totalorder %s17, 0
      %p51 = por %p49, %p50
      %p52 = scmp.ne.s32.totalorder %s41, %s44
      %p53 = scmp.eq.s32.totalorder %s22, 1
      %p54 = por %p52, %p53
      %p55 = scmp.ne.s32.totalorder %s44, %s45
      %p56 = scmp.eq.s32.totalorder %s22, 0
      %p57 = por %p55, %p56
      %p58 = scmp.ne.s32.totalorder %s44, %s45
      %p59 = scmp.eq.s32.totalorder %s23, 1
      %p60 = por %p58, %p59
      %p62 = scmp.ne.s32.totalorder %s45, %s61
      %p63 = scmp.eq.s32.totalorder %s23, 0
      %p64 = por %p62, %p63
      %s65 = ssub.s32 %s24, %s36
      %s66 = ssub.s32 %s25, %s32
      %s67 = sor.u32 %s65, %s66
      %p68 = scmp.eq.s32.totalorder %s67, 0
      %s70 = sadd.s32 %s69, 1
      %s71 = scalar_select %p68, %s69, %s70
      %p74 = pneg %p68
      %p75 = scmp.eq.s32.totalorder %s17, 1
      %p76 = por %p74, %p75
      %p77 = scmp.ne.s32.totalorder %s69, %s72
      %p78 = scmp.eq.s32.totalorder %s17, 0
      %p79 = por %p77, %p78
      %p80 = scmp.ne.s32.totalorder %s69, %s72
      %p81 = scmp.eq.s32.totalorder %s22, 1
      %p82 = por %p80, %p81
      %p83 = scmp.ne.s32.totalorder %s72, %s73
      %p84 = scmp.eq.s32.totalorder %s22, 0
      %p85 = por %p83, %p84
      %p86 = scmp.ne.s32.totalorder %s72, %s73
      %p87 = scmp.eq.s32.totalorder %s23, 1
      %p88 = por %p86, %p87
      %p90 = scmp.ne.s32.totalorder %s73, %s89
      %p91 = scmp.eq.s32.totalorder %s23, 0
      %p92 = por %p90, %p91
      %s93 = ssub.s32 %s24, %s36
      %p94 = scmp.eq.s32.totalorder %s93, 0
      %s96 = sadd.s32 %s95, 1
      %s97 = scalar_select %p94, %s95, %s96
      %p100 = pneg %p94
      %p101 = scmp.eq.s32.totalorder %s17, 1
      %p102 = por %p100, %p101
      %p103 = scmp.ne.s32.totalorder %s95, %s98
      %p104 = scmp.eq.s32.totalorder %s17, 0
      %p105 = por %p103, %p104
      %p106 = scmp.ne.s32.totalorder %s95, %s98
      %p107 = scmp.eq.s32.totalorder %s22, 1
      %p108 = por %p106, %p107
      %p109 = scmp.ne.s32.totalorder %s98, %s99
      %p110 = scmp.eq.s32.totalorder %s22, 0
      %p111 = por %p109, %p110
      %p112 = scmp.ne.s32.totalorder %s98, %s99
      %p113 = scmp.eq.s32.totalorder %s23, 1
      %p114 = por %p112, %p113
      %p116 = scmp.ne.s32.totalorder %s99, %s115
      %p117 = scmp.eq.s32.totalorder %s23, 0
      %p118 = por %p116, %p117
      %p119 = scmp.le.s32.totalorder 1, %s17
      %p120 = scmp.lt.s32.totalorder %s17, 3
      %p121 = pnand %p119, %p120
      %p122 = pneg %p121
      // Predicated region
      $region9: #{tpu_custom_call.1} parent=5 // pred_check
        _
      $region10: #{tpu_custom_call.1} parent=5 // pred_check_branch
        %124 = sbr.rel (%p121) target = $region12
      $region11: #{tpu_custom_call.1} parent=5 // pred_region
        %s125 = ssub.s32 %s17, 1
      $region12: #{tpu_custom_call.1} parent=5 // pred_fallthru
        _
      %p126 = scmp.lt.s32.totalorder %s17, 2
      // Predicated region
      $region13: #{tpu_custom_call.1} parent=5 // pred_check
        %p127 = pneg %p126
      $region14: #{tpu_custom_call.1} parent=5 // pred_check_branch
        %129 = sbr.rel (%p127) target = $region16
      $region15: #{tpu_custom_call.1} parent=5 // pred_region
        // Predicated region
        $region17: #{tpu_custom_call.1} parent=15 // pred_check
          %p130 = pneg %p51
        $region18: #{tpu_custom_call.1} parent=15 // pred_check_branch
          %132 = sbr.rel (%p130) target = $region20
        $region19: #{tpu_custom_call.1} parent=15 // pred_region
          %s133 = sand.u32 %s41, 1
          %s134 = scalar_lea.sflag [#allocation5], %s133
          %s135 = sand.u32 %s41, 1
          %s136 = smul.addr %s135, 8
          %s137 = scalar_lea.vmem [#allocation4], %s136
          %s139 = ssub.s32 128, 128
          %140 = vsyncadd %s134, %s139
          %s141 = sadd.s32 %s25, %s24
          %s142 = smul.addr %s141, 128
          %s143 = scalar_lea.hbm %s0, %s142
          %s145 = sshll.u32 %s137, 4
          %s146 = int_to_ptr.vmem [resolvable:$true] %s145
          %148 = dma.hbm_to_vmem [thread:$0]  %s143, 128, %s146, %s134
        $region20: #{tpu_custom_call.1} parent=15 // pred_fallthru
          _
        // Predicated region
        $region21: #{tpu_custom_call.1} parent=15 // pred_check
          %p149 = pneg %p79
        $region22: #{tpu_custom_call.1} parent=15 // pred_check_branch
          %151 = sbr.rel (%p149) target = $region24
        $region23: #{tpu_custom_call.1} parent=15 // pred_region
          %s152 = sand.u32 %s69, 1
          %s153 = scalar_lea.sflag [#allocation8], %s152
          %s154 = sand.u32 %s69, 1
          %s155 = smul.addr %s154, 8
          %s156 = scalar_lea.vmem [#allocation7], %s155
          %s158 = ssub.s32 128, 128
          %159 = vsyncadd %s153, %s158
          %s160 = sadd.s32 %s25, %s24
          %s161 = smul.addr %s160, 128
          %s162 = scalar_lea.hbm %s1, %s161
          %s164 = sshll.u32 %s156, 4
          %s165 = int_to_ptr.vmem [resolvable:$true] %s164
          %167 = dma.hbm_to_vmem [thread:$0]  %s162, 128, %s165, %s153
        $region24: #{tpu_custom_call.1} parent=15 // pred_fallthru
          _
      $region16: #{tpu_custom_call.1} parent=5 // pred_fallthru
        _
      %p168 = scmp.le.s32.totalorder 1, %s17
      %p169 = scmp.lt.s32.totalorder %s17, 3
      %p170 = pnand %p168, %p169
      %p171 = pneg %p170
      // Predicated region
      $region25: #{tpu_custom_call.1} parent=5 // pred_check
        _
      $region26: #{tpu_custom_call.1} parent=5 // pred_check_branch
        %173 = sbr.rel (%p170) target = $region28
      $region27: #{tpu_custom_call.1} parent=5 // pred_region
        %s174 = ssub.s32 %s17, 1
        %s175 = sand.u32 %s44, 1
        %s176 = scalar_lea.sflag [#allocation5], %s175
        %s177 = sand.u32 %s44, 1
        %s178 = smul.addr %s177, 8
        %s179 = scalar_lea.vmem [#allocation4], %s178
        // Predicated region
        $region29: #{tpu_custom_call.1} parent=27 // pred_check
          %p180 = pneg %p57
        $region30: #{tpu_custom_call.1} parent=27 // pred_check_branch
          %182 = sbr.rel (%p180) target = $region32
        $region31: #{tpu_custom_call.1} parent=27 // pred_region
          %183 = dma.done %s176, 128
        $region32: #{tpu_custom_call.1} parent=27 // pred_fallthru
          _
        %s184 = sand.u32 %s72, 1
        %s185 = scalar_lea.sflag [#allocation8], %s184
        %s186 = sand.u32 %s72, 1
        %s187 = smul.addr %s186, 8
        %s188 = scalar_lea.vmem [#allocation7], %s187
        // Predicated region
        $region33: #{tpu_custom_call.1} parent=27 // pred_check
          %p189 = pneg %p85
        $region34: #{tpu_custom_call.1} parent=27 // pred_check_branch
          %191 = sbr.rel (%p189) target = $region36
        $region35: #{tpu_custom_call.1} parent=27 // pred_region
          %192 = dma.done %s185, 128
        $region36: #{tpu_custom_call.1} parent=27 // pred_fallthru
          _
        %s193 = sand.u32 %s44, 1
        %s194 = scalar_lea.sflag [#allocation5], %s193
        %s195 = sand.u32 %s44, 1
        %s196 = smul.addr %s195, 8
        %s197 = scalar_lea.vmem [#allocation4], %s196
        %p198 = pneg %p57
        %p199 = pneg %p54
        %s200 = sand.u32 %s72, 1
        %s201 = scalar_lea.sflag [#allocation8], %s200
        %s202 = sand.u32 %s72, 1
        %s203 = smul.addr %s202, 8
        %s204 = scalar_lea.vmem [#allocation7], %s203
        %p205 = pneg %p85
        %p206 = pneg %p82
        %p207 = pneg %p111
        %p208 = pneg %p108
        %s209 = sand.u32 %s98, 1
        %s210 = scalar_lea.sflag [#allocation6], %s209
        %s211 = sand.u32 %s98, 1
        %s212 = smul.addr %s211, 2
        %s213 = scalar_lea.vmem [#allocation9], %s212
        %p214 = scmp.eq.s32.totalorder %s27, 0
        // Predicated region
        $region37: #{tpu_custom_call.1} parent=27 // pred_check
          %p215 = pneg %p214
        $region38: #{tpu_custom_call.1} parent=27 // pred_check_branch
          %217 = sbr.rel (%p215) target = $region40
        $region39: #{tpu_custom_call.1} parent=27 // pred_region
          %218 = vst [vmem:[#allocation2] sm:$0x1] 0.0
          %219 = vst [vmem:[#allocation3] sm:$0x1] 0.0
        $region40: #{tpu_custom_call.1} parent=27 // pred_fallthru
          _
        %v220 = vld [vmem:[%s179] sm:$0xff]
        %v221 = vld [vmem:[%s188] sm:$0xff]
        %v222 = vmul.f32 %v220, 0.5
        %v223 = vtanh.pop %v222
        %v224 = vmul.f32 %v223, 0.5
        %v225 = vadd.f32 %v224, 0.5
        %v226 = vld [vmem:[#allocation2] sm:$0x1]
        %v227 = vmul.f32 %v225, %v221
        %v228 = vrot.slane %v227, 4
        %v229 = vadd.f32 %v227, %v228
        %v230 = vrot.slane %v229, 2
        %v231 = vadd.f32 %v229, %v230
        %v232 = vrot.slane %v231, 1
        %v233 = vadd.f32 %v231, %v232
        %v234 = vadd.f32 %v226, %v233
        %235 = vst [vmem:[#allocation2] sm:$0x1] %v234
        %v236 = vld [vmem:[#allocation3] sm:$0x1]
        %v237 = vadd.f32 %v225, %v221
        %v238 = vrot.slane %v237, 4
        %v239 = vadd.f32 %v237, %v238
        %v240 = vrot.slane %v239, 2
        %v241 = vadd.f32 %v239, %v240
        %v242 = vrot.slane %v241, 1
        %v243 = vadd.f32 %v241, %v242
        %v244 = vadd.f32 %v236, %v243
        %245 = vst [vmem:[#allocation3] sm:$0x1] %v244
        // Predicated region
        $region41: #{tpu_custom_call.1} parent=27 // pred_check
          %p246 = pneg %p214
        $region42: #{tpu_custom_call.1} parent=27 // pred_check_branch
          %248 = sbr.rel (%p246) target = $region44
        $region43: #{tpu_custom_call.1} parent=27 // pred_region
          %v249 = vld [vmem:[#allocation2] sm:$0x1]
          %250 = vst [vmem:[%s213] sm:$0x1] %v249
          %v251 = vld [vmem:[#allocation3] sm:$0x1]
          %252 = vst [vmem:[%s213 + $0x1] sm:$0x1] %v251
        $region44: #{tpu_custom_call.1} parent=27 // pred_fallthru
          _
        %s253 = sand.u32 %s98, 1
        %s254 = scalar_lea.sflag [#allocation6], %s253
        %s255 = sand.u32 %s98, 1
        %s256 = smul.addr %s255, 2
        %s257 = scalar_lea.vmem [#allocation9], %s256
        // Predicated region
        $region45: #{tpu_custom_call.1} parent=27 // pred_check
          %p258 = pneg %p108
        $region46: #{tpu_custom_call.1} parent=27 // pred_check_branch
          %260 = sbr.rel (%p258) target = $region48
        $region47: #{tpu_custom_call.1} parent=27 // pred_region
          %s262 = ssub.s32 32, 32
          %263 = vsyncadd %s254, %s262
          %s264 = smul.addr %s26, 32
          %s265 = scalar_lea.hbm %s2, %s264
          %s267 = sshll.u32 %s257, 4
          %s268 = int_to_ptr.vmem [resolvable:$true] %s267
          %270 = dma.vmem_to_hbm [thread:$0]  %s268, 32, %s265, %s254
        $region48: #{tpu_custom_call.1} parent=27 // pred_fallthru
          _
      $region28: #{tpu_custom_call.1} parent=5 // pred_fallthru
        _
      %p271 = scmp.le.s32.totalorder 2, %s17
      // Predicated region
      $region49: #{tpu_custom_call.1} parent=5 // pred_check
        %p272 = pneg %p271
      $region50: #{tpu_custom_call.1} parent=5 // pred_check_branch
        %274 = sbr.rel (%p272) target = $region52
      $region51: #{tpu_custom_call.1} parent=5 // pred_region
        %s275 = ssub.s32 %s17, 2
        // Predicated region
        $region53: #{tpu_custom_call.1} parent=51 // pred_check
          %p276 = pneg %p114
        $region54: #{tpu_custom_call.1} parent=51 // pred_check_branch
          %278 = sbr.rel (%p276) target = $region56
        $region55: #{tpu_custom_call.1} parent=51 // pred_region
          %s279 = sand.u32 %s99, 1
          %s280 = scalar_lea.sflag [#allocation6], %s279
          %s281 = sand.u32 %s99, 1
          %s282 = smul.addr %s281, 2
          %s283 = scalar_lea.vmem [#allocation9], %s282
          %284 = dma.done %s280, 32
        $region56: #{tpu_custom_call.1} parent=51 // pred_fallthru
          _
      $region52: #{tpu_custom_call.1} parent=5 // pred_fallthru
        _
    $region6: #{tpu_custom_call.1} parent=1 // loop_footer
      %s21 = sadd.s32 1, %s17
    $region7: #{tpu_custom_call.1} parent=1 // loop_footer_branch
      %16 = sbr.rel target = $region3
    $region8: #{tpu_custom_call.1} parent=1 // loop_exit
      _
    %285 = vsyncpa [#allocation5], 1
    %s286 = scalar_lea.sflag [#allocation5], 1
    %287 = vsyncpa %s286, 1
    %288 = vsyncpa [#allocation8], 1
    %s289 = scalar_lea.sflag [#allocation8], 1
    %290 = vsyncpa %s289, 1
    %291 = vsyncpa [#allocation6], 1
    %s292 = scalar_lea.sflag [#allocation6], 1
    %293 = vsyncpa %s292, 1

</llo_original>
